<compile_context>
chip_gen: v6e
topology: v6e:2x2x1
jax: 0.10.0
libtpu: 0.0.40
codegen_flags: <defaults>
</compile_context>

<pallas_src>
import jax
import jax.numpy as jnp
from jax.experimental import pallas as pl
from jax.experimental.pallas import tpu as pltpu

DEGREE = 4
OUT_DIM = DEGREE ** 2  # 16

C0 = 0.28209479177387814
C1 = 0.4886025119029199
C2 = [1.0925484305920792, -1.0925484305920792, 0.31539156525252005,
      -1.0925484305920792, 0.5462742152960396]
C3 = [-0.5900435899266435, 2.890611442640554, -0.4570457994644658,
      0.3731763325901154, -0.4570457994644658, 1.445305721320277,
      -0.5900435899266435]
# TODO(synk): degree-5 (C4) branch omitted — this encoder is instantiated with
# degree=4 (out_dim=16), matching the reference forward.

LANE = 128              # lane width (fast axis)
MAX_BLOCK_ROWS = 1024   # sublane rows per grid step (VMEM cap, v7x-safe)
TARGET_STEPS = 4        # >=2 so both v7x TCs get work; 4 also gives pipeline overlap


def sh_kernel(xyz_ref, o_ref):
    # xyz_ref: (3, block_rows, LANE); o_ref: (OUT_DIM, block_rows, LANE)
    x = xyz_ref[0].astype(jnp.float32)
    y = xyz_ref[1].astype(jnp.float32)
    z = xyz_ref[2].astype(jnp.float32)

    xx = x * x
    yy = y * y
    zz = z * z
    xy = x * y
    yz = y * z
    xz = x * z

    odt = o_ref.dtype
    # degree 0
    o_ref[0] = jnp.full(x.shape, C0, dtype=odt)
    # degree 1
    o_ref[1] = (-C1 * y).astype(odt)
    o_ref[2] = (C1 * z).astype(odt)
    o_ref[3] = (-C1 * x).astype(odt)
    # degree 2
    o_ref[4] = (C2[0] * xy).astype(odt)
    o_ref[5] = (C2[1] * yz).astype(odt)
    o_ref[6] = (C2[2] * (2.0 * zz - xx - yy)).astype(odt)
    o_ref[7] = (C2[3] * xz).astype(odt)
    o_ref[8] = (C2[4] * (xx - yy)).astype(odt)
    # degree 3
    o_ref[9] = (C3[0] * y * (3.0 * xx - yy)).astype(odt)
    o_ref[10] = (C3[1] * xy * z).astype(odt)
    o_ref[11] = (C3[2] * y * (4.0 * zz - xx - yy)).astype(odt)
    o_ref[12] = (C3[3] * z * (2.0 * zz - 3.0 * xx - 3.0 * yy)).astype(odt)
    o_ref[13] = (C3[4] * x * (4.0 * zz - xx - yy)).astype(odt)
    o_ref[14] = (C3[5] * z * (xx - yy)).astype(odt)
    o_ref[15] = (C3[6] * x * (xx - 3.0 * yy)).astype(odt)


def _choose_block_rows(rows):
    """Pick (block_rows, rows_padded).

    block_rows is a multiple of 8 (sublane granularity), capped at
    MAX_BLOCK_ROWS, and chosen so the grid has >= TARGET_STEPS steps whenever
    the row count permits (megacore sharding on v7x + pipeline overlap), while
    keeping padding waste below 8 rows per grid step.
    """
    base = ((rows + 7) // 8) * 8                       # sublane-aligned rows
    steps = max(TARGET_STEPS, pl.cdiv(base, MAX_BLOCK_ROWS))
    block = min(MAX_BLOCK_ROWS,
                max(8, ((pl.cdiv(base, steps) + 7) // 8) * 8))
    padded = ((base + block - 1) // block) * block     # multiple of block
    return block, padded


def sh_encode(inp, out_dtype=None):
    """inp: (..., 3) float array -> (..., 16) SH features (degree=4).

    out_dtype: optional output dtype (e.g. jnp.bfloat16) when the consumer
    tolerates it; defaults to inp.dtype to match the PyTorch module.
    """
    assert inp.shape[-1] == 3
    orig_lead = inp.shape[:-1]
    out_dtype = inp.dtype if out_dtype is None else out_dtype

    flat = inp.reshape(-1, 3)
    n = flat.shape[0]

    rows = pl.cdiv(n, LANE)
    block_rows, rows_padded = _choose_block_rows(rows)
    n_padded = rows_padded * LANE

    # Single packed coordinate slab: (n, 3) -> pad -> (3, rows_padded, LANE).
    # One fused XLA pad+transpose pass (instead of three strided column reads).
    if n_padded != n:
        flat = jnp.pad(flat, ((0, n_padded - n), (0, 0)))
    xyz = flat.T.reshape(3, rows_padded, LANE)

    grid = (rows_padded // block_rows,)

    out = pl.pallas_call(
        sh_kernel,
        out_shape=jax.ShapeDtypeStruct((OUT_DIM, rows_padded, LANE), out_dtype),
        grid_spec=pltpu.PrefetchScalarGridSpec(
            num_scalar_prefetch=0,
            grid=grid,
            in_specs=[pl.BlockSpec((3, block_rows, LANE),
                                   lambda i: (0, i, 0))],
            out_specs=pl.BlockSpec((OUT_DIM, block_rows, LANE),
                                   lambda i: (0, i, 0)),
        ),
        compiler_params=pltpu.CompilerParams(
            dimension_semantics=("parallel",),
            vmem_limit_bytes=48 * 1024 * 1024,
        ),
    )(xyz)

    # Channel-major (16, n_padded) -> drop padded tail -> (n, 16) -> (..., 16).
    # Slice before the transpose so pad rows never touch the re-layout pass.
    out = out.reshape(OUT_DIM, n_padded)[:, :n].T
    return out.reshape(*orig_lead, OUT_DIM)


def sh_encode_ref(inp):
    """Pure-JAX reference mirroring the PyTorch forward (degree=4)."""
    x, y, z = inp[..., 0], inp[..., 1], inp[..., 2]
    xx, yy, zz = x * x, y * y, z * z
    xy, yz, xz = x * y, y * z, x * z
    comps = [
        jnp.full_like(x, C0),
        -C1 * y, C1 * z, -C1 * x,
        C2[0] * xy, C2[1] * yz, C2[2] * (2.0 * zz - xx - yy),
        C2[3] * xz, C2[4] * (xx - yy),
        C3[0] * y * (3 * xx - yy), C3[1] * xy * z,
        C3[2] * y * (4 * zz - xx - yy),
        C3[3] * z * (2 * zz - 3 * xx - 3 * yy),
        C3[4] * x * (4 * zz - xx - yy),
        C3[5] * z * (xx - yy), C3[6] * x * (xx - 3 * yy),
    ]
    return jnp.stack(comps, axis=-1)


if __name__ == "__main__":
    key = jax.random.PRNGKey(0)

    # 1) Small batch of direction vectors (single-step grid path).
    dirs = jax.random.normal(key, (2, 200, 3), dtype=jnp.float32)
    dirs = dirs / jnp.linalg.norm(dirs, axis=-1, keepdims=True)

    out = jax.block_until_ready(sh_encode(dirs))
    ref = sh_encode_ref(dirs)
    assert out.shape == (2, 200, OUT_DIM), out.shape
    assert out.dtype == dirs.dtype
    assert jnp.allclose(out, ref, atol=1e-5, rtol=1e-5)

    # 2) Larger point count: exercises the multi-step ("parallel") grid,
    #    padding, and the slice-before-transpose epilogue.
    dirs2 = jax.random.normal(jax.random.PRNGKey(0), (60000, 3),
                              dtype=jnp.float32)
    dirs2 = dirs2 / jnp.linalg.norm(dirs2, axis=-1, keepdims=True)

    out2 = jax.block_until_ready(sh_encode(dirs2))
    ref2 = sh_encode_ref(dirs2)
    assert out2.shape == (60000, OUT_DIM), out2.shape
    assert jnp.allclose(out2, ref2, atol=1e-5, rtol=1e-5)

    # 3) Optional bf16 output path (review item 3): f32 math, cast on store.
    out3 = jax.block_until_ready(sh_encode(dirs, out_dtype=jnp.bfloat16))
    assert out3.dtype == jnp.bfloat16
    assert jnp.allclose(out3.astype(jnp.float32), ref, atol=2e-2, rtol=2e-2)

    print("KERNEL_OK")
</pallas_src>

<mosaic_0001>
module attributes {stable_mosaic.version = 11 : i64} {
  func.func @sh_kernel(%arg0: i32, %arg1: memref<3x8x128xf32, #tpu.memory_space<vmem>>, %arg2: memref<16x8x128xf32, #tpu.memory_space<vmem>>) attributes {dimension_semantics = [#tpu.dimension_semantics<parallel>], iteration_bounds = array<i64: 1>, scalar_prefetch = 0 : i64, scratch_operands = 0 : i64, tpu.core_type = #tpu.core_type<tc>, window_params = [{transform_indices = @transform_0, window_bounds = array<i64: 3, 8, 128>}, {transform_indices = @transform_1, window_bounds = array<i64: 16, 8, 128>}]} {
    %c0 = arith.constant 0 : index
    %c0_0 = arith.constant 0 : index
    %c0_1 = arith.constant 0 : index
    %0 = vector.load %arg1[%c0, %c0_0, %c0_1] : memref<3x8x128xf32, #tpu.memory_space<vmem>>, vector<1x8x128xf32>
    %1 = vector.shape_cast %0 : vector<1x8x128xf32> to vector<8x128xf32>
    %c1 = arith.constant 1 : index
    %c0_2 = arith.constant 0 : index
    %c0_3 = arith.constant 0 : index
    %2 = vector.load %arg1[%c1, %c0_2, %c0_3] : memref<3x8x128xf32, #tpu.memory_space<vmem>>, vector<1x8x128xf32>
    %3 = vector.shape_cast %2 : vector<1x8x128xf32> to vector<8x128xf32>
    %c2 = arith.constant 2 : index
    %c0_4 = arith.constant 0 : index
    %c0_5 = arith.constant 0 : index
    %4 = vector.load %arg1[%c2, %c0_4, %c0_5] : memref<3x8x128xf32, #tpu.memory_space<vmem>>, vector<1x8x128xf32>
    %5 = vector.shape_cast %4 : vector<1x8x128xf32> to vector<8x128xf32>
    %6 = arith.mulf %1, %1 : vector<8x128xf32>
    %7 = arith.mulf %3, %3 : vector<8x128xf32>
    %8 = arith.mulf %5, %5 : vector<8x128xf32>
    %9 = arith.mulf %1, %3 : vector<8x128xf32>
    %10 = arith.mulf %3, %5 : vector<8x128xf32>
    %11 = arith.mulf %1, %5 : vector<8x128xf32>
    %cst = arith.constant 0.282094806 : f32
    %12 = vector.broadcast %cst : f32 to vector<8x128xf32>
    %c0_6 = arith.constant 0 : index
    %c0_7 = arith.constant 0 : index
    %c0_8 = arith.constant 0 : index
    %13 = vector.load %arg2[%c0_6, %c0_7, %c0_8] : memref<16x8x128xf32, #tpu.memory_space<vmem>>, vector<1x8x128xf32>
    %14 = vector.shape_cast %13 : vector<1x8x128xf32> to vector<8x128xf32>
    %15 = vector.shape_cast %12 : vector<8x128xf32> to vector<1x8x128xf32>
    tpu.vector_store %arg2[%c0_6, %c0_7, %c0_8], %15 {strides = array<i32>} : memref<16x8x128xf32, #tpu.memory_space<vmem>>, vector<1x8x128xf32>,
    %cst_9 = arith.constant -0.488602519 : f32
    %16 = vector.broadcast %cst_9 : f32 to vector<8x128xf32>
    %17 = arith.mulf %16, %3 : vector<8x128xf32>
    %c1_10 = arith.constant 1 : index
    %c0_11 = arith.constant 0 : index
    %c0_12 = arith.constant 0 : index
    %18 = vector.load %arg2[%c1_10, %c0_11, %c0_12] : memref<16x8x128xf32, #tpu.memory_space<vmem>>, vector<1x8x128xf32>
    %19 = vector.shape_cast %18 : vector<1x8x128xf32> to vector<8x128xf32>
    %20 = vector.shape_cast %17 : vector<8x128xf32> to vector<1x8x128xf32>
    tpu.vector_store %arg2[%c1_10, %c0_11, %c0_12], %20 {strides = array<i32>} : memref<16x8x128xf32, #tpu.memory_space<vmem>>, vector<1x8x128xf32>,
    %cst_13 = arith.constant 0.488602519 : f32
    %21 = vector.broadcast %cst_13 : f32 to vector<8x128xf32>
    %22 = arith.mulf %21, %5 : vector<8x128xf32>
    %c2_14 = arith.constant 2 : index
    %c0_15 = arith.constant 0 : index
    %c0_16 = arith.constant 0 : index
    %23 = vector.load %arg2[%c2_14, %c0_15, %c0_16] : memref<16x8x128xf32, #tpu.memory_space<vmem>>, vector<1x8x128xf32>
    %24 = vector.shape_cast %23 : vector<1x8x128xf32> to vector<8x128xf32>
    %25 = vector.shape_cast %22 : vector<8x128xf32> to vector<1x8x128xf32>
    tpu.vector_store %arg2[%c2_14, %c0_15, %c0_16], %25 {strides = array<i32>} : memref<16x8x128xf32, #tpu.memory_space<vmem>>, vector<1x8x128xf32>,
    %cst_17 = arith.constant -0.488602519 : f32
    %26 = vector.broadcast %cst_17 : f32 to vector<8x128xf32>
    %27 = arith.mulf %26, %1 : vector<8x128xf32>
    %c3 = arith.constant 3 : index
    %c0_18 = arith.constant 0 : index
    %c0_19 = arith.constant 0 : index
    %28 = vector.load %arg2[%c3, %c0_18, %c0_19] : memref<16x8x128xf32, #tpu.memory_space<vmem>>, vector<1x8x128xf32>
    %29 = vector.shape_cast %28 : vector<1x8x128xf32> to vector<8x128xf32>
    %30 = vector.shape_cast %27 : vector<8x128xf32> to vector<1x8x128xf32>
    tpu.vector_store %arg2[%c3, %c0_18, %c0_19], %30 {strides = array<i32>} : memref<16x8x128xf32, #tpu.memory_space<vmem>>, vector<1x8x128xf32>,
    %cst_20 = arith.constant 1.09254849 : f32
    %31 = vector.broadcast %cst_20 : f32 to vector<8x128xf32>
    %32 = arith.mulf %31, %9 : vector<8x128xf32>
    %c4 = arith.constant 4 : index
    %c0_21 = arith.constant 0 : index
    %c0_22 = arith.constant 0 : index
    %33 = vector.load %arg2[%c4, %c0_21, %c0_22] : memref<16x8x128xf32, #tpu.memory_space<vmem>>, vector<1x8x128xf32>
    %34 = vector.shape_cast %33 : vector<1x8x128xf32> to vector<8x128xf32>
    %35 = vector.shape_cast %32 : vector<8x128xf32> to vector<1x8x128xf32>
    tpu.vector_store %arg2[%c4, %c0_21, %c0_22], %35 {strides = array<i32>} : memref<16x8x128xf32, #tpu.memory_space<vmem>>, vector<1x8x128xf32>,
    %cst_23 = arith.constant -1.09254849 : f32
    %36 = vector.broadcast %cst_23 : f32 to vector<8x128xf32>
    %37 = arith.mulf %36, %10 : vector<8x128xf32>
    %c5 = arith.constant 5 : index
    %c0_24 = arith.constant 0 : index
    %c0_25 = arith.constant 0 : index
    %38 = vector.load %arg2[%c5, %c0_24, %c0_25] : memref<16x8x128xf32, #tpu.memory_space<vmem>>, vector<1x8x128xf32>
    %39 = vector.shape_cast %38 : vector<1x8x128xf32> to vector<8x128xf32>
    %40 = vector.shape_cast %37 : vector<8x128xf32> to vector<1x8x128xf32>
    tpu.vector_store %arg2[%c5, %c0_24, %c0_25], %40 {strides = array<i32>} : memref<16x8x128xf32, #tpu.memory_space<vmem>>, vector<1x8x128xf32>,
    %cst_26 = arith.constant 2.000000e+00 : f32
    %41 = vector.broadcast %cst_26 : f32 to vector<8x128xf32>
    %42 = arith.mulf %41, %8 : vector<8x128xf32>
    %43 = arith.subf %42, %6 : vector<8x128xf32>
    %44 = arith.subf %43, %7 : vector<8x128xf32>
    %cst_27 = arith.constant 0.31539157 : f32
    %45 = vector.broadcast %cst_27 : f32 to vector<8x128xf32>
    %46 = arith.mulf %45, %44 : vector<8x128xf32>
    %c6 = arith.constant 6 : index
    %c0_28 = arith.constant 0 : index
    %c0_29 = arith.constant 0 : index
    %47 = vector.load %arg2[%c6, %c0_28, %c0_29] : memref<16x8x128xf32, #tpu.memory_space<vmem>>, vector<1x8x128xf32>
    %48 = vector.shape_cast %47 : vector<1x8x128xf32> to vector<8x128xf32>
    %49 = vector.shape_cast %46 : vector<8x128xf32> to vector<1x8x128xf32>
    tpu.vector_store %arg2[%c6, %c0_28, %c0_29], %49 {strides = array<i32>} : memref<16x8x128xf32, #tpu.memory_space<vmem>>, vector<1x8x128xf32>,
    %cst_30 = arith.constant -1.09254849 : f32
    %50 = vector.broadcast %cst_30 : f32 to vector<8x128xf32>
    %51 = arith.mulf %50, %11 : vector<8x128xf32>
    %c7 = arith.constant 7 : index
    %c0_31 = arith.constant 0 : index
    %c0_32 = arith.constant 0 : index
    %52 = vector.load %arg2[%c7, %c0_31, %c0_32] : memref<16x8x128xf32, #tpu.memory_space<vmem>>, vector<1x8x128xf32>
    %53 = vector.shape_cast %52 : vector<1x8x128xf32> to vector<8x128xf32>
    %54 = vector.shape_cast %51 : vector<8x128xf32> to vector<1x8x128xf32>
    tpu.vector_store %arg2[%c7, %c0_31, %c0_32], %54 {strides = array<i32>} : memref<16x8x128xf32, #tpu.memory_space<vmem>>, vector<1x8x128xf32>,
    %55 = arith.subf %6, %7 : vector<8x128xf32>
    %cst_33 = arith.constant 0.546274245 : f32
    %56 = vector.broadcast %cst_33 : f32 to vector<8x128xf32>
    %57 = arith.mulf %56, %55 : vector<8x128xf32>
    %c8 = arith.constant 8 : index
    %c0_34 = arith.constant 0 : index
    %c0_35 = arith.constant 0 : index
    %58 = vector.load %arg2[%c8, %c0_34, %c0_35] : memref<16x8x128xf32, #tpu.memory_space<vmem>>, vector<1x8x128xf32>
    %59 = vector.shape_cast %58 : vector<1x8x128xf32> to vector<8x128xf32>
    %60 = vector.shape_cast %57 : vector<8x128xf32> to vector<1x8x128xf32>
    tpu.vector_store %arg2[%c8, %c0_34, %c0_35], %60 {strides = array<i32>} : memref<16x8x128xf32, #tpu.memory_space<vmem>>, vector<1x8x128xf32>,
    %cst_36 = arith.constant -0.590043604 : f32
    %61 = vector.broadcast %cst_36 : f32 to vector<8x128xf32>
    %62 = arith.mulf %61, %3 : vector<8x128xf32>
    %cst_37 = arith.constant 3.000000e+00 : f32
    %63 = vector.broadcast %cst_37 : f32 to vector<8x128xf32>
    %64 = arith.mulf %63, %6 : vector<8x128xf32>
    %65 = arith.subf %64, %7 : vector<8x128xf32>
    %66 = arith.mulf %62, %65 : vector<8x128xf32>
    %c9 = arith.constant 9 : index
    %c0_38 = arith.constant 0 : index
    %c0_39 = arith.constant 0 : index
    %67 = vector.load %arg2[%c9, %c0_38, %c0_39] : memref<16x8x128xf32, #tpu.memory_space<vmem>>, vector<1x8x128xf32>
    %68 = vector.shape_cast %67 : vector<1x8x128xf32> to vector<8x128xf32>
    %69 = vector.shape_cast %66 : vector<8x128xf32> to vector<1x8x128xf32>
    tpu.vector_store %arg2[%c9, %c0_38, %c0_39], %69 {strides = array<i32>} : memref<16x8x128xf32, #tpu.memory_space<vmem>>, vector<1x8x128xf32>,
    %cst_40 = arith.constant 2.89061141 : f32
    %70 = vector.broadcast %cst_40 : f32 to vector<8x128xf32>
    %71 = arith.mulf %70, %9 : vector<8x128xf32>
    %72 = arith.mulf %71, %5 : vector<8x128xf32>
    %c10 = arith.constant 10 : index
    %c0_41 = arith.constant 0 : index
    %c0_42 = arith.constant 0 : index
    %73 = vector.load %arg2[%c10, %c0_41, %c0_42] : memref<16x8x128xf32, #tpu.memory_space<vmem>>, vector<1x8x128xf32>
    %74 = vector.shape_cast %73 : vector<1x8x128xf32> to vector<8x128xf32>
    %75 = vector.shape_cast %72 : vector<8x128xf32> to vector<1x8x128xf32>
    tpu.vector_store %arg2[%c10, %c0_41, %c0_42], %75 {strides = array<i32>} : memref<16x8x128xf32, #tpu.memory_space<vmem>>, vector<1x8x128xf32>,
    %cst_43 = arith.constant -0.457045794 : f32
    %76 = vector.broadcast %cst_43 : f32 to vector<8x128xf32>
    %77 = arith.mulf %76, %3 : vector<8x128xf32>
    %cst_44 = arith.constant 4.000000e+00 : f32
    %78 = vector.broadcast %cst_44 : f32 to vector<8x128xf32>
    %79 = arith.mulf %78, %8 : vector<8x128xf32>
    %80 = arith.subf %79, %6 : vector<8x128xf32>
    %81 = arith.subf %80, %7 : vector<8x128xf32>
    %82 = arith.mulf %77, %81 : vector<8x128xf32>
    %c11 = arith.constant 11 : index
    %c0_45 = arith.constant 0 : index
    %c0_46 = arith.constant 0 : index
    %83 = vector.load %arg2[%c11, %c0_45, %c0_46] : memref<16x8x128xf32, #tpu.memory_space<vmem>>, vector<1x8x128xf32>
    %84 = vector.shape_cast %83 : vector<1x8x128xf32> to vector<8x128xf32>
    %85 = vector.shape_cast %82 : vector<8x128xf32> to vector<1x8x128xf32>
    tpu.vector_store %arg2[%c11, %c0_45, %c0_46], %85 {strides = array<i32>} : memref<16x8x128xf32, #tpu.memory_space<vmem>>, vector<1x8x128xf32>,
    %cst_47 = arith.constant 0.373176336 : f32
    %86 = vector.broadcast %cst_47 : f32 to vector<8x128xf32>
    %87 = arith.mulf %86, %5 : vector<8x128xf32>
    %cst_48 = arith.constant 2.000000e+00 : f32
    %88 = vector.broadcast %cst_48 : f32 to vector<8x128xf32>
    %89 = arith.mulf %88, %8 : vector<8x128xf32>
    %cst_49 = arith.constant 3.000000e+00 : f32
    %90 = vector.broadcast %cst_49 : f32 to vector<8x128xf32>
    %91 = arith.mulf %90, %6 : vector<8x128xf32>
    %92 = arith.subf %89, %91 : vector<8x128xf32>
    %cst_50 = arith.constant 3.000000e+00 : f32
    %93 = vector.broadcast %cst_50 : f32 to vector<8x128xf32>
    %94 = arith.mulf %93, %7 : vector<8x128xf32>
    %95 = arith.subf %92, %94 : vector<8x128xf32>
    %96 = arith.mulf %87, %95 : vector<8x128xf32>
    %c12 = arith.constant 12 : index
    %c0_51 = arith.constant 0 : index
    %c0_52 = arith.constant 0 : index
    %97 = vector.load %arg2[%c12, %c0_51, %c0_52] : memref<16x8x128xf32, #tpu.memory_space<vmem>>, vector<1x8x128xf32>
    %98 = vector.shape_cast %97 : vector<1x8x128xf32> to vector<8x128xf32>
    %99 = vector.shape_cast %96 : vector<8x128xf32> to vector<1x8x128xf32>
    tpu.vector_store %arg2[%c12, %c0_51, %c0_52], %99 {strides = array<i32>} : memref<16x8x128xf32, #tpu.memory_space<vmem>>, vector<1x8x128xf32>,
    %cst_53 = arith.constant -0.457045794 : f32
    %100 = vector.broadcast %cst_53 : f32 to vector<8x128xf32>
    %101 = arith.mulf %100, %1 : vector<8x128xf32>
    %cst_54 = arith.constant 4.000000e+00 : f32
    %102 = vector.broadcast %cst_54 : f32 to vector<8x128xf32>
    %103 = arith.mulf %102, %8 : vector<8x128xf32>
    %104 = arith.subf %103, %6 : vector<8x128xf32>
    %105 = arith.subf %104, %7 : vector<8x128xf32>
    %106 = arith.mulf %101, %105 : vector<8x128xf32>
    %c13 = arith.constant 13 : index
    %c0_55 = arith.constant 0 : index
    %c0_56 = arith.constant 0 : index
    %107 = vector.load %arg2[%c13, %c0_55, %c0_56] : memref<16x8x128xf32, #tpu.memory_space<vmem>>, vector<1x8x128xf32>
    %108 = vector.shape_cast %107 : vector<1x8x128xf32> to vector<8x128xf32>
    %109 = vector.shape_cast %106 : vector<8x128xf32> to vector<1x8x128xf32>
    tpu.vector_store %arg2[%c13, %c0_55, %c0_56], %109 {strides = array<i32>} : memref<16x8x128xf32, #tpu.memory_space<vmem>>, vector<1x8x128xf32>,
    %cst_57 = arith.constant 1.44530571 : f32
    %110 = vector.broadcast %cst_57 : f32 to vector<8x128xf32>
    %111 = arith.mulf %110, %5 : vector<8x128xf32>
    %112 = arith.subf %6, %7 : vector<8x128xf32>
    %113 = arith.mulf %111, %112 : vector<8x128xf32>
    %c14 = arith.constant 14 : index
    %c0_58 = arith.constant 0 : index
    %c0_59 = arith.constant 0 : index
    %114 = vector.load %arg2[%c14, %c0_58, %c0_59] : memref<16x8x128xf32, #tpu.memory_space<vmem>>, vector<1x8x128xf32>
    %115 = vector.shape_cast %114 : vector<1x8x128xf32> to vector<8x128xf32>
    %116 = vector.shape_cast %113 : vector<8x128xf32> to vector<1x8x128xf32>
    tpu.vector_store %arg2[%c14, %c0_58, %c0_59], %116 {strides = array<i32>} : memref<16x8x128xf32, #tpu.memory_space<vmem>>, vector<1x8x128xf32>,
    %cst_60 = arith.constant -0.590043604 : f32
    %117 = vector.broadcast %cst_60 : f32 to vector<8x128xf32>
    %118 = arith.mulf %117, %1 : vector<8x128xf32>
    %cst_61 = arith.constant 3.000000e+00 : f32
    %119 = vector.broadcast %cst_61 : f32 to vector<8x128xf32>
    %120 = arith.mulf %119, %7 : vector<8x128xf32>
    %121 = arith.subf %6, %120 : vector<8x128xf32>
    %122 = arith.mulf %118, %121 : vector<8x128xf32>
    %c15 = arith.constant 15 : index
    %c0_62 = arith.constant 0 : index
    %c0_63 = arith.constant 0 : index
    %123 = vector.load %arg2[%c15, %c0_62, %c0_63] : memref<16x8x128xf32, #tpu.memory_space<vmem>>, vector<1x8x128xf32>
    %124 = vector.shape_cast %123 : vector<1x8x128xf32> to vector<8x128xf32>
    %125 = vector.shape_cast %122 : vector<8x128xf32> to vector<1x8x128xf32>
    tpu.vector_store %arg2[%c15, %c0_62, %c0_63], %125 {strides = array<i32>} : memref<16x8x128xf32, #tpu.memory_space<vmem>>, vector<1x8x128xf32>,
    return
  }
  func.func @transform_0(%arg0: i32) -> (i32, i32, i32) {
    %c0_i32 = arith.constant 0 : i32
    %c0_i32_0 = arith.constant 0 : i32
    %c0_i32_1 = arith.constant 0 : i32
    return %c0_i32, %arg0, %c0_i32_0 : i32, i32, i32
  }
  func.func @transform_1(%arg0: i32) -> (i32, i32, i32) {
    %c0_i32 = arith.constant 0 : i32
    %c0_i32_0 = arith.constant 0 : i32
    %c0_i32_1 = arith.constant 0 : i32
    return %c0_i32, %arg0, %c0_i32_0 : i32, i32, i32
  }
}

</mosaic_0001>

<llo_original>
// kernel: tpu_custom_call.1
$region0: #{tpu_custom_call.1}
  #allocation0 [shape = 'u32[]', space=smem, size = 0x4, offset = 0x4, fixed_abs, tag = 'smem constant byte address 0x4 - core index']
  #allocation1 [shape = 'u32[144,128]{1,0:T(1,128)}', space=vmem, size = 0x12000, scoped, tag = 'internal scratch']
  %s0 = inlined_call_operand.hbm [shape: f32[3,8,128], index: 0, kind: input, shape index: {}]
  %s1 = inlined_call_operand.hbm [shape: f32[16,8,128], index: 1, kind: output, shape index: {}]
  %s2 = sld [smem:[#allocation0]]
  $region18: #{tpu_custom_call.1} parent=0
    _
  %s4 = ssub.s32 1, %s2
  %s5 = scalar_select 0, %s4, %s2
  $region1: #{tpu_custom_call.1} parent=0
    #allocation2 [shape = 'u8[12288]{0}', space=vmem, size = 0x3000, scoped, tag = 'input window, operand 0, single buffered']
    #allocation3 [shape = 's32[1]{0}', space=sflag, size = 0x4, scoped, tag = 'scoped memory for tpu_custom_call.1']
    #allocation4 [shape = 's32[1]{0}', space=sflag, size = 0x4, scoped, tag = 'scoped memory for tpu_custom_call.1']
    #allocation5 [shape = 'u8[65536]{0}', space=vmem, size = 0x10000, scoped, tag = 'output window, operand 0, single buffered']
    %6 = vsyncpa [#allocation3], 0
    %7 = vsyncpa [#allocation4], 0
    // Predicated region
    $region2: #{tpu_custom_call.1} parent=1 // pred_check
      _
    $region3: #{tpu_custom_call.1} parent=1 // pred_check_branch
      %9 = sbr.rel (0) target = $region5
    $region4: #{tpu_custom_call.1} parent=1 // pred_region
      %s11 = ssub.s32 384, 384
      %12 = vsyncadd [#allocation3], %s11
      %s13 = sshll.u32 [#allocation2], 4
      %s14 = int_to_ptr.vmem [resolvable:$true] %s13
      %19 = dma.hbm_to_vmem [thread:$0]  %s0, 384, %s14, [#allocation3], 128, 128, 8
    $region5: #{tpu_custom_call.1} parent=1 // pred_fallthru
      _
    // Predicated region
    $region6: #{tpu_custom_call.1} parent=1 // pred_check
      _
    $region7: #{tpu_custom_call.1} parent=1 // pred_check_branch
      %21 = sbr.rel (0) target = $region9
    $region8: #{tpu_custom_call.1} parent=1 // pred_region
      %22 = dma.done [#allocation3], 384
    $region9: #{tpu_custom_call.1} parent=1 // pred_fallthru
      _
    %v23 = vld [vmem:[#allocation2] sm:$0xff]
    %s24 = scalar_lea.vmem [#allocation2], 8
    %v25 = vld [vmem:[%s24] sm:$0xff]
    %s26 = scalar_lea.vmem [#allocation2], 16
    %v27 = vld [vmem:[%s26] sm:$0xff]
    %v28 = vmul.f32 %v23, %v23
    %v29 = vmul.f32 %v25, %v25
    %v30 = vmul.f32 %v27, %v27
    %v31 = vmul.f32 %v23, %v25
    %v32 = vmul.f32 %v25, %v27
    %v33 = vmul.f32 %v23, %v27
    %34 = vst [vmem:[#allocation5] sm:$0xff] 0.2820948
    %v35 = vmul.f32 %v25, -0.48860252
    %s36 = scalar_lea.vmem [#allocation5], 8
    %37 = vst [vmem:[%s36] sm:$0xff] %v35
    %v38 = vmul.f32 %v27, 0.48860252
    %s39 = scalar_lea.vmem [#allocation5], 16
    %40 = vst [vmem:[%s39] sm:$0xff] %v38
    %v41 = vmul.f32 %v23, -0.48860252
    %s42 = scalar_lea.vmem [#allocation5], 24
    %43 = vst [vmem:[%s42] sm:$0xff] %v41
    %v44 = vmul.f32 %v31, 1.0925485
    %s45 = scalar_lea.vmem [#allocation5], 32
    %46 = vst [vmem:[%s45] sm:$0xff] %v44
    %v47 = vmul.f32 %v32, -1.0925485
    %s48 = scalar_lea.vmem [#allocation5], 40
    %49 = vst [vmem:[%s48] sm:$0xff] %v47
    %v50 = vmul.f32 %v30, 2.0
    %v51 = vsub.f32 %v50, %v28
    %v52 = vsub.f32 %v51, %v29
    %v53 = vmul.f32 %v52, 0.31539157
    %s54 = scalar_lea.vmem [#allocation5], 48
    %55 = vst [vmem:[%s54] sm:$0xff] %v53
    %v56 = vmul.f32 %v33, -1.0925485
    %s57 = scalar_lea.vmem [#allocation5], 56
    %58 = vst [vmem:[%s57] sm:$0xff] %v56
    %v59 = vsub.f32 %v28, %v29
    %v60 = vmul.f32 %v59, 0.54627424
    %s61 = scalar_lea.vmem [#allocation5], 64
    %62 = vst [vmem:[%s61] sm:$0xff] %v60
    %v63 = vmul.f32 %v25, -0.5900436
    %v64 = vmul.f32 %v28, 3.0
    %v65 = vsub.f32 %v64, %v29
    %v66 = vmul.f32 %v63, %v65
    %s67 = scalar_lea.vmem [#allocation5], 72
    %68 = vst [vmem:[%s67] sm:$0xff] %v66
    %v69 = vmul.f32 %v31, 2.8906114
    %v70 = vmul.f32 %v69, %v27
    %s71 = scalar_lea.vmem [#allocation5], 80
    %72 = vst [vmem:[%s71] sm:$0xff] %v70
    %v73 = vmul.f32 %v25, -0.4570458
    %v74 = vmul.f32 %v30, 4.0
    %v75 = vsub.f32 %v74, %v28
    %v76 = vsub.f32 %v75, %v29
    %v77 = vmul.f32 %v73, %v76
    %s78 = scalar_lea.vmem [#allocation5], 88
    %79 = vst [vmem:[%s78] sm:$0xff] %v77
    %v80 = vmul.f32 %v27, 0.37317634
    %v81 = vsub.f32 %v50, %v64
    %v82 = vmul.f32 %v29, 3.0
    %v83 = vsub.f32 %v81, %v82
    %v84 = vmul.f32 %v80, %v83
    %s85 = scalar_lea.vmem [#allocation5], 96
    %86 = vst [vmem:[%s85] sm:$0xff] %v84
    %v87 = vmul.f32 %v23, -0.4570458
    %v88 = vmul.f32 %v87, %v76
    %s89 = scalar_lea.vmem [#allocation5], 104
    %90 = vst [vmem:[%s89] sm:$0xff] %v88
    %v91 = vmul.f32 %v27, 1.4453057
    %v92 = vmul.f32 %v91, %v59
    %s93 = scalar_lea.vmem [#allocation5], 112
    %94 = vst [vmem:[%s93] sm:$0xff] %v92
    %v95 = vmul.f32 %v23, -0.5900436
    %v96 = vsub.f32 %v28, %v82
    %v97 = vmul.f32 %v95, %v96
    %s98 = scalar_lea.vmem [#allocation5], 120
    %99 = vst [vmem:[%s98] sm:$0xff] %v97
    // Predicated region
    $region10: #{tpu_custom_call.1} parent=1 // pred_check
      _
    $region11: #{tpu_custom_call.1} parent=1 // pred_check_branch
      %101 = sbr.rel (0) target = $region13
    $region12: #{tpu_custom_call.1} parent=1 // pred_region
      %s103 = ssub.s32 2048, 2048
      %104 = vsyncadd [#allocation4], %s103
      %s105 = sshll.u32 [#allocation5], 4
      %s106 = int_to_ptr.vmem [resolvable:$true] %s105
      %111 = dma.vmem_to_hbm [thread:$0]  %s106, 2048, %s1, [#allocation4], 128, 128, 8
    $region13: #{tpu_custom_call.1} parent=1 // pred_fallthru
      _
    // Predicated region
    $region14: #{tpu_custom_call.1} parent=1 // pred_check
      _
    $region15: #{tpu_custom_call.1} parent=1 // pred_check_branch
      %113 = sbr.rel (0) target = $region17
    $region16: #{tpu_custom_call.1} parent=1 // pred_region
      %114 = dma.done [#allocation4], 2048
    $region17: #{tpu_custom_call.1} parent=1 // pred_fallthru
      _
    %115 = vsyncpa [#allocation3], 1
    %116 = vsyncpa [#allocation4], 1

</llo_original>
